<compile_context>
chip_gen: v5e
topology: v5e:2x2
jax: 0.10.0
libtpu: 0.0.40
codegen_flags: <defaults>
</compile_context>

<pallas_src>
import functools

import jax
import jax.numpy as jnp
from jax import lax
from jax.experimental import pallas as pl
from jax.experimental.pallas import tpu as pltpu

LANE = 128


def _dice_partial_kernel(rows_valid, rows_per_tile, blocks_per_split,
                         cls_ref, x_ref, t_ref, inter_ref, summ_ref):
    # cls_ref:   (C, 1, 128)  int32 class id per slab (resident, constant block)
    # x_ref:     (C, RT, 128) input dtype, one spatial tile
    # t_ref:     (RT, 128)    int32 class indices
    # inter_ref: (C, 128)     f32 per-lane partial sums (resident across s axis)
    # summ_ref:  (C, 128)     f32 per-lane partial sums
    s = pl.program_id(2)

    @pl.when(s == 0)
    def _init():
        inter_ref[...] = jnp.zeros_like(inter_ref)
        summ_ref[...] = jnp.zeros_like(summ_ref)

    x = x_ref[...].astype(jnp.float32)       # (C, RT, 128) f32
    t = t_ref[...]                           # (RT, 128)    int32

    if rows_valid is not None:
        # Ragged edge (static condition): rows at/past `rows_valid` are garbage
        # loaded past the array end -- zero their x contribution and point
        # their target at no class.
        p = pl.program_id(0)
        row0 = (p * blocks_per_split + s) * rows_per_tile
        rows = row0 + lax.broadcasted_iota(jnp.int32, t.shape, 0)
        ok = rows < rows_valid               # (RT, 128) bool
        t = jnp.where(ok, t, -1)
        x = jnp.where(ok[None, :, :], x, 0.0)

    # Fused one-hot: broadcast compare against the resident class-id rows.
    # (For bf16 inputs the compare/select could stay bf16 on v6e/v7x; f32 is
    # kept here for numerical parity with the reference and v5e's VPU.)
    onehot = (t[None, :, :] == cls_ref[...]).astype(jnp.float32)  # (C, RT, 128)

    # Sublane-axis reduction only (pure VPU adds); the 128-lane reduce is done
    # once per batch item in the JAX epilogue.
    inter_ref[...] += jnp.sum(onehot * x, axis=1)                 # (C, 128)
    summ_ref[...] += jnp.sum(x + onehot, axis=1)                  # (C, 128)


def dice_loss_pallas(inputs, target, eps=1e-6):
    """inputs: [N, C, H, W] float (f32 or bf16); target: [N, H, W] int class ids."""
    N, C, H, W = inputs.shape
    S = H * W

    x = inputs.reshape(N, C, S)                   # free reshape (contiguous NCHW)
    t = target.astype(jnp.int32).reshape(N, S)

    # The sublane-folded layout needs the spatial size to be a multiple of 128.
    # Common segmentation shapes already are; otherwise pad only the <=127
    # element tail (x with 0, target with -1: both contribute nothing).
    if S % LANE != 0:
        pad = LANE - S % LANE
        x = jnp.pad(x, ((0, 0), (0, 0), (0, pad)))
        t = jnp.pad(t, ((0, 0), (0, pad)), constant_values=-1)
        S += pad

    R = S // LANE
    x = x.reshape(N, C, R, LANE)                  # (N, C, R, 128)
    t = t.reshape(N, R, LANE)                     # (N, R, 128)

    # --- tile sizing ---------------------------------------------------------
    # Bytes per 128-lane spatial row held in VMEM: C input lanes + one int32
    # target lane; this layout has no sublane padding to account for.  Target
    # ~8 MiB of HBM bytes per grid step (DMA time >> ~0.35us/step overhead on
    # all generations); double-buffered that is ~17 MiB, well inside the
    # explicit 48 MiB VMEM limit below (v5e/v6e: 128 MiB physical, v7x: 64).
    itemsize = jnp.dtype(inputs.dtype).itemsize
    bytes_per_row = LANE * (C * itemsize + 4)
    rows_budget = max(8, ((8 << 20) // bytes_per_row) // 8 * 8)
    RT = R if R <= rows_budget else rows_budget   # full extent, or multiple of 8
    num_blocks = -(-R // RT)

    # Megacore: with N >= 2 the "parallel" batch axis already spreads over the
    # two TensorCores on v7x; for N == 1 split the spatial blocks instead.
    n_split = 2 if (N == 1 and num_blocks >= 2 and num_blocks % 2 == 0) else 1
    blocks_per_split = num_blocks // n_split

    ragged = n_split * blocks_per_split * RT != R
    rows_valid = R if ragged else None

    cls_ids = jnp.broadcast_to(
        jnp.arange(C, dtype=jnp.int32)[:, None, None], (C, 1, LANE))

    kernel = functools.partial(
        _dice_partial_kernel, rows_valid, RT, blocks_per_split)

    part_shape = jax.ShapeDtypeStruct((n_split, N, C, LANE), jnp.float32)
    inter_p, summ_p = pl.pallas_call(
        kernel,
        out_shape=(part_shape, part_shape),
        grid_spec=pltpu.PrefetchScalarGridSpec(
            num_scalar_prefetch=0,
            grid=(n_split, N, blocks_per_split),
            in_specs=[
                # Resident class-id rows (block index never changes -> no re-DMA).
                pl.BlockSpec((C, 1, LANE), lambda p, n, s: (0, 0, 0)),
                # Batch dim squeezed -> kernel sees (C, RT, 128).
                pl.BlockSpec((None, C, RT, LANE),
                             lambda p, n, s: (n, 0, p * blocks_per_split + s, 0)),
                # Batch dim squeezed -> kernel sees (RT, 128).
                pl.BlockSpec((None, RT, LANE),
                             lambda p, n, s: (n, p * blocks_per_split + s, 0)),
            ],
            # Partial-sum blocks stay resident in VMEM across the spatial axis
            # and are written back once per (split, batch) item.
            out_specs=(
                pl.BlockSpec((None, None, C, LANE), lambda p, n, s: (p, n, 0, 0)),
                pl.BlockSpec((None, None, C, LANE), lambda p, n, s: (p, n, 0, 0)),
            ),
        ),
        compiler_params=pltpu.CompilerParams(
            dimension_semantics=("parallel", "parallel", "arbitrary"),
            vmem_limit_bytes=48 * 1024 * 1024),
    )(cls_ids, x, t)

    # Tiny O(N*C) epilogue: combine per-core / per-lane partial sums, dice, mean.
    inter = inter_p.sum(axis=(0, -1))             # (N, C)
    summ = summ_p.sum(axis=(0, -1))               # (N, C)
    dice = 1.0 - 2.0 * inter / (summ + eps)
    return dice.mean()


def dice_loss_ref(inputs, target, eps=1e-6):
    """Pure-JAX reference mirroring the PyTorch module exactly."""
    N, C, H, W = inputs.shape
    onehot = jax.nn.one_hot(target, C, axis=1, dtype=jnp.float32)  # [N,C,H,W]
    xf = inputs.astype(jnp.float32)
    inter = (xf * onehot).sum(-1).sum(-1)
    summ = (xf + onehot).sum(-1).sum(-1)
    dice = 1.0 - 2.0 * inter / (summ + eps)
    return dice.mean()


if __name__ == "__main__":
    key = jax.random.PRNGKey(0)
    k_x, k_t = jax.random.split(key)

    N, C, H, W = 2, 4, 16, 16
    # "inputs" are per-class scores/probabilities (any float works for dice math).
    inputs = jax.nn.softmax(
        jax.random.normal(k_x, (N, C, H, W), dtype=jnp.float32), axis=1)
    target = jax.random.randint(k_t, (N, H, W), 0, C, dtype=jnp.int32)

    out = jax.block_until_ready(dice_loss_pallas(inputs, target))
    ref = jax.block_until_ready(dice_loss_ref(inputs, target))
    assert jnp.allclose(out, ref, rtol=1e-5, atol=1e-5), (out, ref)

    print("KERNEL_OK")
</pallas_src>

<mosaic_0001>
module attributes {stable_mosaic.version = 11 : i64} {
  func.func @_dice_partial_kernel(%arg0: i32, %arg1: i32, %arg2: i32, %arg3: memref<4x1x128xi32, #tpu.memory_space<vmem>>, %arg4: memref<1x4x2x128xf32, #tpu.memory_space<vmem>>, %arg5: memref<1x2x128xi32, #tpu.memory_space<vmem>>, %arg6: memref<1x1x4x128xf32, #tpu.memory_space<vmem>>, %arg7: memref<1x1x4x128xf32, #tpu.memory_space<vmem>>) attributes {dimension_semantics = [#tpu.dimension_semantics<parallel>, #tpu.dimension_semantics<parallel>, #tpu.dimension_semantics<arbitrary>], iteration_bounds = array<i64: 1, 2, 1>, scalar_prefetch = 0 : i64, scratch_operands = 0 : i64, tpu.core_type = #tpu.core_type<tc>, window_params = [{pipeline_mode = #tpu.pipeline_mode<synchronous>, transform_indices = @transform_0, window_bounds = array<i64: 4, 1, 128>}, {transform_indices = @transform_1, window_bounds = array<i64: 1, 4, 2, 128>}, {transform_indices = @transform_2, window_bounds = array<i64: 1, 2, 128>}, {transform_indices = @transform_3, window_bounds = array<i64: 1, 1, 4, 128>}, {transform_indices = @transform_4, window_bounds = array<i64: 1, 1, 4, 128>}]} {
    %c0_i32 = arith.constant 0 : i32
    %0 = arith.cmpi eq, %arg2, %c0_i32 : i32
    %1 = arith.extui %0 : i1 to i32
    %c0_i32_0 = arith.constant 0 : i32
    %2 = arith.cmpi ne, %1, %c0_i32_0 : i32
    scf.if %2 {
      %cst_27 = arith.constant 0.000000e+00 : f32
      %30 = vector.broadcast %cst_27 : f32 to vector<4x128xf32>
      %c0_28 = arith.constant 0 : index
      %c0_29 = arith.constant 0 : index
      %c0_30 = arith.constant 0 : index
      %c0_31 = arith.constant 0 : index
      %31 = vector.load %arg6[%c0_28, %c0_29, %c0_30, %c0_31] : memref<1x1x4x128xf32, #tpu.memory_space<vmem>>, vector<1x1x4x128xf32>
      %32 = vector.shape_cast %31 : vector<1x1x4x128xf32> to vector<4x128xf32>
      %33 = vector.shape_cast %30 : vector<4x128xf32> to vector<1x1x4x128xf32>
      tpu.vector_store %arg6[%c0_28, %c0_29, %c0_30, %c0_31], %33 {strides = array<i32>} : memref<1x1x4x128xf32, #tpu.memory_space<vmem>>, vector<1x1x4x128xf32>,
      %cst_32 = arith.constant 0.000000e+00 : f32
      %34 = vector.broadcast %cst_32 : f32 to vector<4x128xf32>
      %c0_33 = arith.constant 0 : index
      %c0_34 = arith.constant 0 : index
      %c0_35 = arith.constant 0 : index
      %c0_36 = arith.constant 0 : index
      %35 = vector.load %arg7[%c0_33, %c0_34, %c0_35, %c0_36] : memref<1x1x4x128xf32, #tpu.memory_space<vmem>>, vector<1x1x4x128xf32>
      %36 = vector.shape_cast %35 : vector<1x1x4x128xf32> to vector<4x128xf32>
      %37 = vector.shape_cast %34 : vector<4x128xf32> to vector<1x1x4x128xf32>
      tpu.vector_store %arg7[%c0_33, %c0_34, %c0_35, %c0_36], %37 {strides = array<i32>} : memref<1x1x4x128xf32, #tpu.memory_space<vmem>>, vector<1x1x4x128xf32>,
    } else {
    }
    %c0 = arith.constant 0 : index
    %c0_1 = arith.constant 0 : index
    %c0_2 = arith.constant 0 : index
    %c0_3 = arith.constant 0 : index
    %3 = vector.load %arg4[%c0, %c0_1, %c0_2, %c0_3] : memref<1x4x2x128xf32, #tpu.memory_space<vmem>>, vector<1x4x2x128xf32>
    %4 = vector.shape_cast %3 : vector<1x4x2x128xf32> to vector<4x2x128xf32>
    %c0_4 = arith.constant 0 : index
    %c0_5 = arith.constant 0 : index
    %c0_6 = arith.constant 0 : index
    %5 = vector.load %arg5[%c0_4, %c0_5, %c0_6] : memref<1x2x128xi32, #tpu.memory_space<vmem>>, vector<1x2x128xi32>
    %6 = vector.shape_cast %5 : vector<1x2x128xi32> to vector<2x128xi32>
    %7 = vector.shape_cast %6 : vector<2x128xi32> to vector<1x2x128xi32>
    %c0_7 = arith.constant 0 : index
    %c0_8 = arith.constant 0 : index
    %c0_9 = arith.constant 0 : index
    %8 = vector.load %arg3[%c0_7, %c0_8, %c0_9] : memref<4x1x128xi32, #tpu.memory_space<vmem>>, vector<4x1x128xi32>
    %9 = vector.broadcast %7 : vector<1x2x128xi32> to vector<4x2x128xi32>
    %10 = vector.broadcast %8 : vector<4x1x128xi32> to vector<4x2x128xi32>
    %11 = arith.cmpi eq, %9, %10 : vector<4x2x128xi32>
    %12 = arith.extui %11 : vector<4x2x128xi1> to vector<4x2x128xi32>
    %13 = arith.sitofp %12 : vector<4x2x128xi32> to vector<4x2x128xf32>
    %c0_10 = arith.constant 0 : index
    %c0_11 = arith.constant 0 : index
    %c0_12 = arith.constant 0 : index
    %c0_13 = arith.constant 0 : index
    %14 = vector.load %arg6[%c0_10, %c0_11, %c0_12, %c0_13] : memref<1x1x4x128xf32, #tpu.memory_space<vmem>>, vector<1x1x4x128xf32>
    %15 = vector.shape_cast %14 : vector<1x1x4x128xf32> to vector<4x128xf32>
    %16 = arith.mulf %13, %4 : vector<4x2x128xf32>
    %cst = arith.constant dense<0.000000e+00> : vector<4x128xf32>
    %17 = vector.multi_reduction <add>, %16, %cst [1] : vector<4x2x128xf32> to vector<4x128xf32>
    %18 = arith.addf %15, %17 : vector<4x128xf32>
    %c0_14 = arith.constant 0 : index
    %c0_15 = arith.constant 0 : index
    %c0_16 = arith.constant 0 : index
    %c0_17 = arith.constant 0 : index
    %19 = vector.load %arg6[%c0_14, %c0_15, %c0_16, %c0_17] : memref<1x1x4x128xf32, #tpu.memory_space<vmem>>, vector<1x1x4x128xf32>
    %20 = vector.shape_cast %19 : vector<1x1x4x128xf32> to vector<4x128xf32>
    %21 = vector.shape_cast %18 : vector<4x128xf32> to vector<1x1x4x128xf32>
    tpu.vector_store %arg6[%c0_14, %c0_15, %c0_16, %c0_17], %21 {strides = array<i32>} : memref<1x1x4x128xf32, #tpu.memory_space<vmem>>, vector<1x1x4x128xf32>,
    %c0_18 = arith.constant 0 : index
    %c0_19 = arith.constant 0 : index
    %c0_20 = arith.constant 0 : index
    %c0_21 = arith.constant 0 : index
    %22 = vector.load %arg7[%c0_18, %c0_19, %c0_20, %c0_21] : memref<1x1x4x128xf32, #tpu.memory_space<vmem>>, vector<1x1x4x128xf32>
    %23 = vector.shape_cast %22 : vector<1x1x4x128xf32> to vector<4x128xf32>
    %24 = arith.addf %4, %13 : vector<4x2x128xf32>
    %cst_22 = arith.constant dense<0.000000e+00> : vector<4x128xf32>
    %25 = vector.multi_reduction <add>, %24, %cst_22 [1] : vector<4x2x128xf32> to vector<4x128xf32>
    %26 = arith.addf %23, %25 : vector<4x128xf32>
    %c0_23 = arith.constant 0 : index
    %c0_24 = arith.constant 0 : index
    %c0_25 = arith.constant 0 : index
    %c0_26 = arith.constant 0 : index
    %27 = vector.load %arg7[%c0_23, %c0_24, %c0_25, %c0_26] : memref<1x1x4x128xf32, #tpu.memory_space<vmem>>, vector<1x1x4x128xf32>
    %28 = vector.shape_cast %27 : vector<1x1x4x128xf32> to vector<4x128xf32>
    %29 = vector.shape_cast %26 : vector<4x128xf32> to vector<1x1x4x128xf32>
    tpu.vector_store %arg7[%c0_23, %c0_24, %c0_25, %c0_26], %29 {strides = array<i32>} : memref<1x1x4x128xf32, #tpu.memory_space<vmem>>, vector<1x1x4x128xf32>,
    return
  }
  func.func @transform_0(%arg0: i32, %arg1: i32, %arg2: i32) -> (i32, i32, i32) {
    %c0_i32 = arith.constant 0 : i32
    %c0_i32_0 = arith.constant 0 : i32
    %c0_i32_1 = arith.constant 0 : i32
    %c0_i32_2 = arith.constant 0 : i32
    return %c0_i32, %c0_i32_0, %c0_i32_1 : i32, i32, i32
  }
  func.func @transform_1(%arg0: i32, %arg1: i32, %arg2: i32) -> (i32, i32, i32, i32) {
    %c1_i32 = arith.constant 1 : i32
    %0 = arith.muli %arg0, %c1_i32 : i32
    %1 = arith.addi %0, %arg2 : i32
    %c0_i32 = arith.constant 0 : i32
    %c0_i32_0 = arith.constant 0 : i32
    %c0_i32_1 = arith.constant 0 : i32
    return %arg1, %c0_i32, %1, %c0_i32_0 : i32, i32, i32, i32
  }
  func.func @transform_2(%arg0: i32, %arg1: i32, %arg2: i32) -> (i32, i32, i32) {
    %c1_i32 = arith.constant 1 : i32
    %0 = arith.muli %arg0, %c1_i32 : i32
    %1 = arith.addi %0, %arg2 : i32
    %c0_i32 = arith.constant 0 : i32
    %c0_i32_0 = arith.constant 0 : i32
    return %arg1, %1, %c0_i32 : i32, i32, i32
  }
  func.func @transform_3(%arg0: i32, %arg1: i32, %arg2: i32) -> (i32, i32, i32, i32) {
    %c0_i32 = arith.constant 0 : i32
    %c0_i32_0 = arith.constant 0 : i32
    %c0_i32_1 = arith.constant 0 : i32
    return %arg0, %arg1, %c0_i32, %c0_i32_0 : i32, i32, i32, i32
  }
  func.func @transform_4(%arg0: i32, %arg1: i32, %arg2: i32) -> (i32, i32, i32, i32) {
    %c0_i32 = arith.constant 0 : i32
    %c0_i32_0 = arith.constant 0 : i32
    %c0_i32_1 = arith.constant 0 : i32
    return %arg0, %arg1, %c0_i32, %c0_i32_0 : i32, i32, i32, i32
  }
}

</mosaic_0001>

<llo_original>
// kernel: tpu_custom_call.1
$region0: #{tpu_custom_call.1}
  #allocation0 [shape = 'u32[]', space=smem, size = 0x4, offset = 0x4, fixed_abs, tag = 'smem constant byte address 0x4 - core index']
  #allocation1 [shape = 'u32[72,128]{1,0:T(1,128)}', space=vmem, size = 0x9000, scoped, tag = 'internal scratch']
  %s0 = inlined_call_operand.hbm [shape: s32[4,1,128], index: 0, kind: input, shape index: {}]
  %s1 = inlined_call_operand.hbm [shape: f32[2,4,2,128], index: 1, kind: input, shape index: {}]
  %s2 = inlined_call_operand.hbm [shape: s32[2,2,128], index: 2, kind: input, shape index: {}]
  %s3 = inlined_call_operand.hbm [shape: f32[1,2,4,128], index: 3, kind: output, shape index: {0}]
  %s4 = inlined_call_operand.hbm [shape: f32[1,2,4,128], index: 4, kind: output, shape index: {1}]
  %5 = xla_tuple %s3, %s4
  %s6 = sld [smem:[#allocation0]]
  $region69: #{tpu_custom_call.1} parent=0
    _
  %s8 = ssub.s32 1, %s6
  %s9 = scalar_select 0, %s8, %s6
  $region1: #{tpu_custom_call.1} parent=0
    #allocation2 [shape = 'u8[2048]{0}', space=vmem, size = 0x800, scoped, tag = 'input window, operand 0, single buffered']
    #allocation3 [shape = 's32[2]{0}', space=sflag, size = 0x8, scoped, tag = 'scoped memory for tpu_custom_call.1']
    #allocation4 [shape = 's32[2]{0}', space=sflag, size = 0x8, scoped, tag = 'scoped memory for tpu_custom_call.1']
    #allocation5 [shape = 'u8[8192]{0}', space=vmem, size = 0x2000, scoped, tag = 'input window, operand 1']
    #allocation6 [shape = 's32[2]{0}', space=sflag, size = 0x8, scoped, tag = 'scoped memory for tpu_custom_call.1']
    #allocation7 [shape = 'u8[2048]{0}', space=vmem, size = 0x800, scoped, tag = 'input window, operand 2']
    #allocation8 [shape = 'u8[4096]{0}', space=vmem, size = 0x1000, scoped, tag = 'output window, operand 0']
    #allocation9 [shape = 'u8[4096]{0}', space=vmem, size = 0x1000, scoped, tag = 'output window, operand 1']
    #allocation10 [shape = 's32[2]{0}', space=sflag, size = 0x8, scoped, tag = 'scoped memory for tpu_custom_call.1']
    %10 = vsyncpa [#allocation3], 0
    %11 = vsyncpa [#allocation6], 0
    %s12 = scalar_lea.sflag [#allocation6], 1
    %13 = vsyncpa %s12, 0
    %14 = vsyncpa [#allocation4], 0
    %s15 = scalar_lea.sflag [#allocation4], 1
    %16 = vsyncpa %s15, 0
    %17 = vsyncpa [#allocation10], 0
    %s18 = scalar_lea.sflag [#allocation10], 1
    %19 = vsyncpa %s18, 0
    loop: start=0, step=1, limit=4
    $region2: #{tpu_custom_call.1} parent=1 // loop_pre_header
      _
    $region3: #{tpu_custom_call.1} parent=1 // loop_header
      %s21 = sphi 0, %s25
      %p22 = scmp.ge.s32.totalorder %s21, 4
      %s28 = sphi 0, %s47
      %s29 = sphi 0, %s43
      %s30 = sphi 0, %s39
      %s31 = sphi 0, %s28
      %s32 = sphi 0, %s29
      %s33 = sphi 0, %s30
      %s34 = sphi 0, %s31
      %s35 = sphi 0, %s32
      %s36 = sphi 0, %s33
      %s48 = sphi 0, %s48
      %s50 = sphi 0, %s48
      %s51 = sphi 0, %s50
      %s65 = sphi 0, %s51
      %s75 = sphi 0, %s77
      %s78 = sphi 0, %s75
      %s79 = sphi 0, %s78
      %s95 = sphi 0, %s79
      %s105 = sphi 0, %s107
      %s108 = sphi 0, %s105
      %s109 = sphi 0, %s108
      %s125 = sphi 0, %s109
      %s133 = sphi 0, %s135
      %s136 = sphi 0, %s133
      %s137 = sphi 0, %s136
      %s153 = sphi 0, %s137
      %s161 = sphi 0, %s163
      %s164 = sphi 0, %s161
      %s165 = sphi 0, %s164
      %s181 = sphi 0, %s165
    $region4: #{tpu_custom_call.1} parent=1 // loop_header_branch
      %24 = sbr.rel (%p22) target = $region8
    $region5: #{tpu_custom_call.1} parent=1 // loop_body
      %s26 = ssub.s32 %s21, 1
      %s27 = ssub.s32 %s21, 2
      %s37 = sadd.s32 1, %s30
      %p38 = scmp.ge.s32.totalorder %s37, 1
      %s39 = scalar_select %p38, 0, %s37
      %s40 = sadd.s32 1, %s29
      %s41 = scalar_select %p38, %s40, %s29
      %p42 = scmp.ge.s32.totalorder %s41, 2
      %s43 = scalar_select %p42, 0, %s41
      %s44 = sadd.s32 1, %s28
      %s45 = scalar_select %p42, %s44, %s28
      %p46 = scmp.ge.s32.totalorder %s45, 1
      %s47 = scalar_select %p46, 0, %s45
      %s49 = sadd.s32 %s48, 1
      %p52 = scmp.eq.s32.totalorder %s21, 1
      %p53 = scmp.ne.s32.totalorder %s48, %s50
      %p54 = scmp.eq.s32.totalorder %s21, 0
      %p55 = por %p53, %p54
      %p56 = scmp.ne.s32.totalorder %s48, %s50
      %p57 = scmp.eq.s32.totalorder %s26, 1
      %p58 = por %p56, %p57
      %p59 = scmp.ne.s32.totalorder %s50, %s51
      %p60 = scmp.eq.s32.totalorder %s26, 0
      %p61 = por %p59, %p60
      %p62 = scmp.ne.s32.totalorder %s50, %s51
      %p63 = scmp.eq.s32.totalorder %s27, 1
      %p64 = por %p62, %p63
      %p66 = scmp.ne.s32.totalorder %s51, %s65
      %p67 = scmp.eq.s32.totalorder %s27, 0
      %p68 = por %p66, %p67
      %s69 = sadd.s32 %s28, %s30
      %s70 = sadd.s32 %s47, %s39
      %s71 = ssub.s32 %s29, %s43
      %s72 = ssub.s32 %s69, %s70
      %s73 = sor.u32 %s71, %s72
      %p74 = scmp.eq.s32.totalorder %s73, 0
      %s76 = sadd.s32 %s75, 1
      %s77 = scalar_select %p74, %s75, %s76
      %p80 = pneg %p74
      %p81 = scmp.eq.s32.totalorder %s21, 1
      %p82 = por %p80, %p81
      %p83 = scmp.ne.s32.totalorder %s75, %s78
      %p84 = scmp.eq.s32.totalorder %s21, 0
      %p85 = por %p83, %p84
      %p86 = scmp.ne.s32.totalorder %s75, %s78
      %p87 = scmp.eq.s32.totalorder %s26, 1
      %p88 = por %p86, %p87
      %p89 = scmp.ne.s32.totalorder %s78, %s79
      %p90 = scmp.eq.s32.totalorder %s26, 0
      %p91 = por %p89, %p90
      %p92 = scmp.ne.s32.totalorder %s78, %s79
      %p93 = scmp.eq.s32.totalorder %s27, 1
      %p94 = por %p92, %p93
      %p96 = scmp.ne.s32.totalorder %s79, %s95
      %p97 = scmp.eq.s32.totalorder %s27, 0
      %p98 = por %p96, %p97
      %s99 = sadd.s32 %s28, %s30
      %s100 = sadd.s32 %s47, %s39
      %s101 = ssub.s32 %s29, %s43
      %s102 = ssub.s32 %s99, %s100
      %s103 = sor.u32 %s101, %s102
      %p104 = scmp.eq.s32.totalorder %s103, 0
      %s106 = sadd.s32 %s105, 1
      %s107 = scalar_select %p104, %s105, %s106
      %p110 = pneg %p104
      %p111 = scmp.eq.s32.totalorder %s21, 1
      %p112 = por %p110, %p111
      %p113 = scmp.ne.s32.totalorder %s105, %s108
      %p114 = scmp.eq.s32.totalorder %s21, 0
      %p115 = por %p113, %p114
      %p116 = scmp.ne.s32.totalorder %s105, %s108
      %p117 = scmp.eq.s32.totalorder %s26, 1
      %p118 = por %p116, %p117
      %p119 = scmp.ne.s32.totalorder %s108, %s109
      %p120 = scmp.eq.s32.totalorder %s26, 0
      %p121 = por %p119, %p120
      %p122 = scmp.ne.s32.totalorder %s108, %s109
      %p123 = scmp.eq.s32.totalorder %s27, 1
      %p124 = por %p122, %p123
      %p126 = scmp.ne.s32.totalorder %s109, %s125
      %p127 = scmp.eq.s32.totalorder %s27, 0
      %p128 = por %p126, %p127
      %s129 = ssub.s32 %s28, %s47
      %s130 = ssub.s32 %s29, %s43
      %s131 = sor.u32 %s129, %s130
      %p132 = scmp.eq.s32.totalorder %s131, 0
      %s134 = sadd.s32 %s133, 1
      %s135 = scalar_select %p132, %s133, %s134
      %p138 = pneg %p132
      %p139 = scmp.eq.s32.totalorder %s21, 1
      %p140 = por %p138, %p139
      %p141 = scmp.ne.s32.totalorder %s133, %s136
      %p142 = scmp.eq.s32.totalorder %s21, 0
      %p143 = por %p141, %p142
      %p144 = scmp.ne.s32.totalorder %s133, %s136
      %p145 = scmp.eq.s32.totalorder %s26, 1
      %p146 = por %p144, %p145
      %p147 = scmp.ne.s32.totalorder %s136, %s137
      %p148 = scmp.eq.s32.totalorder %s26, 0
      %p149 = por %p147, %p148
      %p150 = scmp.ne.s32.totalorder %s136, %s137
      %p151 = scmp.eq.s32.totalorder %s27, 1
      %p152 = por %p150, %p151
      %p154 = scmp.ne.s32.totalorder %s137, %s153
      %p155 = scmp.eq.s32.totalorder %s27, 0
      %p156 = por %p154, %p155
      %s157 = ssub.s32 %s28, %s47
      %s158 = ssub.s32 %s29, %s43
      %s159 = sor.u32 %s157, %s158
      %p160 = scmp.eq.s32.totalorder %s159, 0
      %s162 = sadd.s32 %s161, 1
      %s163 = scalar_select %p160, %s161, %s162
      %p166 = pneg %p160
      %p167 = scmp.eq.s32.totalorder %s21, 1
      %p168 = por %p166, %p167
      %p169 = scmp.ne.s32.totalorder %s161, %s164
      %p170 = scmp.eq.s32.totalorder %s21, 0
      %p171 = por %p169, %p170
      %p172 = scmp.ne.s32.totalorder %s161, %s164
      %p173 = scmp.eq.s32.totalorder %s26, 1
      %p174 = por %p172, %p173
      %p175 = scmp.ne.s32.totalorder %s164, %s165
      %p176 = scmp.eq.s32.totalorder %s26, 0
      %p177 = por %p175, %p176
      %p178 = scmp.ne.s32.totalorder %s164, %s165
      %p179 = scmp.eq.s32.totalorder %s27, 1
      %p180 = por %p178, %p179
      %p182 = scmp.ne.s32.totalorder %s165, %s181
      %p183 = scmp.eq.s32.totalorder %s27, 0
      %p184 = por %p182, %p183
      %p185 = scmp.le.s32.totalorder 1, %s21
      %p186 = scmp.lt.s32.totalorder %s21, 3
      %p187 = pnand %p185, %p186
      %p188 = pneg %p187
      // Predicated region
      $region9: #{tpu_custom_call.1} parent=5 // pred_check
        _
      $region10: #{tpu_custom_call.1} parent=5 // pred_check_branch
        %190 = sbr.rel (%p187) target = $region12
      $region11: #{tpu_custom_call.1} parent=5 // pred_region
        %s191 = ssub.s32 %s21, 1
        // Predicated region
        $region13: #{tpu_custom_call.1} parent=11 // pred_check
          %p192 = pneg %p61
        $region14: #{tpu_custom_call.1} parent=11 // pred_check_branch
          %194 = sbr.rel (%p192) target = $region16
        $region15: #{tpu_custom_call.1} parent=11 // pred_region
          %196 = vsyncadd [#allocation3], 0
          %s197 = sshll.u32 %s0, 4
          %s198 = int_to_ptr.hbm [resolvable:$true] %s197
          %s199 = sshll.u32 [#allocation2], 4
          %s200 = int_to_ptr.vmem [resolvable:$true] %s199
          %205 = dma.hbm_to_vmem [thread:$0]  %s198, 64, %s200, [#allocation3], 16, 16, 1
        $region16: #{tpu_custom_call.1} parent=11 // pred_fallthru
          _
      $region12: #{tpu_custom_call.1} parent=5 // pred_fallthru
        _
      %p206 = scmp.lt.s32.totalorder %s21, 2
      // Predicated region
      $region17: #{tpu_custom_call.1} parent=5 // pred_check
        %p207 = pneg %p206
      $region18: #{tpu_custom_call.1} parent=5 // pred_check_branch
        %209 = sbr.rel (%p207) target = $region20
      $region19: #{tpu_custom_call.1} parent=5 // pred_region
        // Predicated region
        $region21: #{tpu_custom_call.1} parent=19 // pred_check
          %p210 = pneg %p85
        $region22: #{tpu_custom_call.1} parent=19 // pred_check_branch
          %212 = sbr.rel (%p210) target = $region24
        $region23: #{tpu_custom_call.1} parent=19 // pred_region
          %s213 = sand.u32 %s21, 1
          %s214 = scalar_lea.sflag [#allocation6], %s213
          %s215 = sand.u32 %s75, 1
          %s216 = smul.addr %s215, 8
          %s217 = scalar_lea.vmem [#allocation5], %s216
          %s218 = sadd.s32 %s28, %s30
          %220 = vsyncadd %s214, 0
          %s221 = smul.addr %s29, 4
          %s222 = sadd.s32 %s218, %s221
          %s223 = smul.addr %s222, 2
          %s224 = scalar_lea.hbm %s1, %s223
          %s225 = sshll.u32 %s224, 4
          %s226 = int_to_ptr.hbm [resolvable:$true] %s225
          %s227 = sshll.u32 %s217, 4
          %s228 = int_to_ptr.vmem [resolvable:$true] %s227
          %233 = dma.hbm_to_vmem [thread:$0]  %s226, 128, %s228, %s214, 32, 32, 2
        $region24: #{tpu_custom_call.1} parent=19 // pred_fallthru
          _
        // Predicated region
        $region25: #{tpu_custom_call.1} parent=19 // pred_check
          %p234 = pneg %p115
        $region26: #{tpu_custom_call.1} parent=19 // pred_check_branch
          %236 = sbr.rel (%p234) target = $region28
        $region27: #{tpu_custom_call.1} parent=19 // pred_region
          %s237 = sand.u32 %s21, 1
          %s238 = scalar_lea.sflag [#allocation6], %s237
          %s239 = sand.u32 %s105, 1
          %s240 = smul.addr %s239, 2
          %s241 = scalar_lea.vmem [#allocation7], %s240
          %s242 = sadd.s32 %s28, %s30
          %244 = vsyncadd %s238, 0
          %s245 = sadd.s32 %s242, %s29
          %s246 = smul.addr %s245, 2
          %s247 = scalar_lea.hbm %s2, %s246
          %s249 = sshll.u32 %s247, 4
          %s250 = int_to_ptr.hbm [resolvable:$true] %s249
          %s251 = sshll.u32 %s241, 4
          %s252 = int_to_ptr.vmem [resolvable:$true] %s251
          %254 = dma.hbm_to_vmem [thread:$0]  %s250, 32, %s252, %s238
        $region28: #{tpu_custom_call.1} parent=19 // pred_fallthru
          _
      $region20: #{tpu_custom_call.1} parent=5 // pred_fallthru
        _
      %p255 = scmp.le.s32.totalorder 1, %s21
      %p256 = scmp.lt.s32.totalorder %s21, 3
      %p257 = pnand %p255, %p256
      %p258 = pneg %p257
      // Predicated region
      $region29: #{tpu_custom_call.1} parent=5 // pred_check
        _
      $region30: #{tpu_custom_call.1} parent=5 // pred_check_branch
        %260 = sbr.rel (%p257) target = $region32
      $region31: #{tpu_custom_call.1} parent=5 // pred_region
        %s261 = ssub.s32 %s21, 1
        // Predicated region
        $region33: #{tpu_custom_call.1} parent=31 // pred_check
          %p262 = pneg %p61
        $region34: #{tpu_custom_call.1} parent=31 // pred_check_branch
          %264 = sbr.rel (%p262) target = $region36
        $region35: #{tpu_custom_call.1} parent=31 // pred_region
          %266 = dma.done [#allocation3], 64
        $region36: #{tpu_custom_call.1} parent=31 // pred_fallthru
          _
        %s267 = sand.u32 %s26, 1
        %s268 = scalar_lea.sflag [#allocation6], %s267
        %s269 = sand.u32 %s78, 1
        %s270 = smul.addr %s269, 8
        %s271 = scalar_lea.vmem [#allocation5], %s270
        // Predicated region
        $region37: #{tpu_custom_call.1} parent=31 // pred_check
          %p272 = pneg %p91
        $region38: #{tpu_custom_call.1} parent=31 // pred_check_branch
          %274 = sbr.rel (%p272) target = $region40
        $region39: #{tpu_custom_call.1} parent=31 // pred_region
          %276 = dma.done %s268, 128
        $region40: #{tpu_custom_call.1} parent=31 // pred_fallthru
          _
        %s277 = sand.u32 %s26, 1
        %s278 = scalar_lea.sflag [#allocation6], %s277
        %s279 = sand.u32 %s108, 1
        %s280 = smul.addr %s279, 2
        %s281 = scalar_lea.vmem [#allocation7], %s280
        // Predicated region
        $region41: #{tpu_custom_call.1} parent=31 // pred_check
          %p282 = pneg %p121
        $region42: #{tpu_custom_call.1} parent=31 // pred_check_branch
          %284 = sbr.rel (%p282) target = $region44
        $region43: #{tpu_custom_call.1} parent=31 // pred_region
          %286 = dma.done %s278, 32
        $region44: #{tpu_custom_call.1} parent=31 // pred_fallthru
          _
        %p287 = pneg %p61
        %p288 = pneg %p58
        %s289 = sand.u32 %s26, 1
        %s290 = scalar_lea.sflag [#allocation6], %s289
        %s291 = sand.u32 %s78, 1
        %s292 = smul.addr %s291, 8
        %s293 = scalar_lea.vmem [#allocation5], %s292
        %p294 = pneg %p91
        %p295 = pneg %p88
        %s296 = sand.u32 %s26, 1
        %s297 = scalar_lea.sflag [#allocation6], %s296
        %s298 = sand.u32 %s108, 1
        %s299 = smul.addr %s298, 2
        %s300 = scalar_lea.vmem [#allocation7], %s299
        %p301 = pneg %p121
        %p302 = pneg %p118
        %p303 = pneg %p149
        %p304 = pneg %p146
        %s305 = sand.u32 %s136, 1
        %s306 = scalar_lea.sflag [#allocation4], %s305
        %s307 = sand.u32 %s136, 1
        %s308 = smul.addr %s307, 4
        %s309 = scalar_lea.vmem [#allocation8], %s308
        %p310 = pneg %p177
        %p311 = pneg %p174
        %s312 = sand.u32 %s164, 1
        %s313 = scalar_lea.sflag [#allocation10], %s312
        %s314 = sand.u32 %s164, 1
        %s315 = smul.addr %s314, 4
        %s316 = scalar_lea.vmem [#allocation9], %s315
        %s317 = sadd.s32 %s31, %s33
        %s318 = sadd.s32 %s31, %s33
        %p319 = scmp.eq.s32.totalorder %s33, 0
        // Predicated region
        $region45: #{tpu_custom_call.1} parent=31 // pred_check
          %p320 = pneg %p319
        $region46: #{tpu_custom_call.1} parent=31 // pred_check_branch
          %322 = sbr.rel (%p320) target = $region48
        $region47: #{tpu_custom_call.1} parent=31 // pred_region
          %323 = vst [vmem:[%s309] sm:$0xf] 0.0
          %324 = vst [vmem:[%s316] sm:$0xf] 0.0
        $region48: #{tpu_custom_call.1} parent=31 // pred_fallthru
          _
        %v325 = vld [vmem:[%s271] sm:$0x3]
        %v326 = vld [vmem:[%s271 + $0x2] sm:$0x3]
        %v327 = vld [vmem:[%s271 + $0x4] sm:$0x3]
        %v328 = vld [vmem:[%s271 + $0x6] sm:$0x3]
        %v329 = vld [vmem:[%s281] sm:$0x3]
        %v330 = vld [vmem:[#allocation2] sm:$0x1]
        %v331 = vld [vmem:[#allocation2 + $0x1] sm:$0x1]
        %v332 = vld [vmem:[#allocation2 + $0x2] sm:$0x1]
        %v333 = vld [vmem:[#allocation2 + $0x3] sm:$0x1]
        %v334 = vperm.slane %v330, 0
        %v335 = vperm.slane %v331, 0
        %v336 = vperm.slane %v332, 0
        %v337 = vperm.slane %v333, 0
        %vm338 = vcmp.eq.s32.totalorder %v329, %v334
        %vm339 = vcmp.eq.s32.totalorder %v329, %v335
        %vm340 = vcmp.eq.s32.totalorder %v329, %v336
        %vm341 = vcmp.eq.s32.totalorder %v329, %v337
        %v342 = vsel %vm338, 1, 0
        %v343 = vsel %vm339, 1, 0
        %v344 = vsel %vm340, 1, 0
        %v345 = vsel %vm341, 1, 0
        %v346 = vcvt.s32.f32 %v342
        %v347 = vcvt.s32.f32 %v343
        %v348 = vcvt.s32.f32 %v344
        %v349 = vcvt.s32.f32 %v345
        %v350 = vld [vmem:[%s309] sm:$0xf]
        %v351 = vmul.f32 %v346, %v325
        %v352 = vmul.f32 %v347, %v326
        %v353 = vmul.f32 %v348, %v327
        %v354 = vmul.f32 %v349, %v328
        %vm355 = vcmask 1041408
        %v356 = vsel %vm355, %v351, 0.0
        %v357 = vrot.slane %v356, 4
        %v358 = vadd.f32 %v356, %v357
        %v359 = vrot.slane %v358, 2
        %v360 = vadd.f32 %v358, %v359
        %v361 = vrot.slane %v360, 1
        %v362 = vadd.f32 %v360, %v361
        %v363 = vsel %vm355, %v352, 0.0
        %v364 = vrot.slane %v363, 4
        %v365 = vadd.f32 %v363, %v364
        %v366 = vrot.slane %v365, 2
        %v367 = vadd.f32 %v365, %v366
        %v368 = vrot.slane %v367, 1
        %v369 = vadd.f32 %v367, %v368
        %v370 = vsel %vm355, %v353, 0.0
        %v371 = vrot.slane %v370, 4
        %v372 = vadd.f32 %v370, %v371
        %v373 = vrot.slane %v372, 2
        %v374 = vadd.f32 %v372, %v373
        %v375 = vrot.slane %v374, 1
        %v376 = vadd.f32 %v374, %v375
        %v377 = vsel %vm355, %v354, 0.0
        %v378 = vrot.slane %v377, 4
        %v379 = vadd.f32 %v377, %v378
        %v380 = vrot.slane %v379, 2
        %v381 = vadd.f32 %v379, %v380
        %v382 = vrot.slane %v381, 1
        %v383 = vadd.f32 %v381, %v382
        %vm388 = vcmask 1041409
        %v389 = vsel %vm388, %v369, %v362
        %vm390 = vcmask 1042434
        %v391 = vsel %vm390, %v376, %v389
        %vm392 = vcmask 1043459
        %v393 = vsel %vm392, %v383, %v391
        %v395 = vadd.f32 %v350, %v393
        %396 = vst [vmem:[%s309] sm:$0xf] %v395
        %v397 = vld [vmem:[%s316] sm:$0xf]
        %v398 = vadd.f32 %v325, %v346
        %v399 = vadd.f32 %v326, %v347
        %v400 = vadd.f32 %v327, %v348
        %v401 = vadd.f32 %v328, %v349
        %v402 = vsel %vm355, %v398, 0.0
        %v403 = vrot.slane %v402, 4
        %v404 = vadd.f32 %v402, %v403
        %v405 = vrot.slane %v404, 2
        %v406 = vadd.f32 %v404, %v405
        %v407 = vrot.slane %v406, 1
        %v408 = vadd.f32 %v406, %v407
        %v409 = vsel %vm355, %v399, 0.0
        %v410 = vrot.slane %v409, 4
        %v411 = vadd.f32 %v409, %v410
        %v412 = vrot.slane %v411, 2
        %v413 = vadd.f32 %v411, %v412
        %v414 = vrot.slane %v413, 1
        %v415 = vadd.f32 %v413, %v414
        %v416 = vsel %vm355, %v400, 0.0
        %v417 = vrot.slane %v416, 4
        %v418 = vadd.f32 %v416, %v417
        %v419 = vrot.slane %v418, 2
        %v420 = vadd.f32 %v418, %v419
        %v421 = vrot.slane %v420, 1
        %v422 = vadd.f32 %v420, %v421
        %v423 = vsel %vm355, %v401, 0.0
        %v424 = vrot.slane %v423, 4
        %v425 = vadd.f32 %v423, %v424
        %v426 = vrot.slane %v425, 2
        %v427 = vadd.f32 %v425, %v426
        %v428 = vrot.slane %v427, 1
        %v429 = vadd.f32 %v427, %v428
        %v434 = vsel %vm388, %v415, %v408
        %v435 = vsel %vm390, %v422, %v434
        %v436 = vsel %vm392, %v429, %v435
        %v438 = vadd.f32 %v397, %v436
        %439 = vst [vmem:[%s316] sm:$0xf] %v438
        %s440 = sand.u32 %s136, 1
        %s441 = scalar_lea.sflag [#allocation4], %s440
        %s442 = sand.u32 %s136, 1
        %s443 = smul.addr %s442, 4
        %s444 = scalar_lea.vmem [#allocation8], %s443
        %s445 = sand.u32 %s164, 1
        %s446 = scalar_lea.sflag [#allocation10], %s445
        %s447 = sand.u32 %s164, 1
        %s448 = smul.addr %s447, 4
        %s449 = scalar_lea.vmem [#allocation9], %s448
        // Predicated region
        $region49: #{tpu_custom_call.1} parent=31 // pred_check
          %p450 = pneg %p146
        $region50: #{tpu_custom_call.1} parent=31 // pred_check_branch
          %452 = sbr.rel (%p450) target = $region52
        $region51: #{tpu_custom_call.1} parent=31 // pred_region
          %454 = vsyncadd %s441, 0
          %s455 = smul.addr %s31, 2
          %s456 = sadd.s32 %s32, %s455
          %s457 = smul.addr %s456, 4
          %s458 = scalar_lea.hbm %s3, %s457
          %s460 = sshll.u32 %s444, 4
          %s461 = int_to_ptr.vmem [resolvable:$true] %s460
          %s462 = sshll.u32 %s458, 4
          %s463 = int_to_ptr.hbm [resolvable:$true] %s462
          %465 = dma.vmem_to_hbm [thread:$0]  %s461, 64, %s463, %s441
        $region52: #{tpu_custom_call.1} parent=31 // pred_fallthru
          _
        // Predicated region
        $region53: #{tpu_custom_call.1} parent=31 // pred_check
          %p466 = pneg %p174
        $region54: #{tpu_custom_call.1} parent=31 // pred_check_branch
          %468 = sbr.rel (%p466) target = $region56
        $region55: #{tpu_custom_call.1} parent=31 // pred_region
          %470 = vsyncadd %s446, 0
          %s471 = smul.addr %s31, 2
          %s472 = sadd.s32 %s32, %s471
          %s473 = smul.addr %s472, 4
          %s474 = scalar_lea.hbm %s4, %s473
          %s476 = sshll.u32 %s449, 4
          %s477 = int_to_ptr.vmem [resolvable:$true] %s476
          %s478 = sshll.u32 %s474, 4
          %s479 = int_to_ptr.hbm [resolvable:$true] %s478
          %481 = dma.vmem_to_hbm [thread:$0]  %s477, 64, %s479, %s446
        $region56: #{tpu_custom_call.1} parent=31 // pred_fallthru
          _
      $region32: #{tpu_custom_call.1} parent=5 // pred_fallthru
        _
      %p482 = scmp.le.s32.totalorder 2, %s21
      // Predicated region
      $region57: #{tpu_custom_call.1} parent=5 // pred_check
        %p483 = pneg %p482
      $region58: #{tpu_custom_call.1} parent=5 // pred_check_branch
        %485 = sbr.rel (%p483) target = $region60
      $region59: #{tpu_custom_call.1} parent=5 // pred_region
        %s486 = ssub.s32 %s21, 2
        // Predicated region
        $region61: #{tpu_custom_call.1} parent=59 // pred_check
          %p487 = pneg %p152
        $region62: #{tpu_custom_call.1} parent=59 // pred_check_branch
          %489 = sbr.rel (%p487) target = $region64
        $region63: #{tpu_custom_call.1} parent=59 // pred_region
          %s490 = sand.u32 %s137, 1
          %s491 = scalar_lea.sflag [#allocation4], %s490
          %s492 = sand.u32 %s137, 1
          %s493 = smul.addr %s492, 4
          %s494 = scalar_lea.vmem [#allocation8], %s493
          %496 = dma.done %s491, 64
        $region64: #{tpu_custom_call.1} parent=59 // pred_fallthru
          _
        // Predicated region
        $region65: #{tpu_custom_call.1} parent=59 // pred_check
          %p497 = pneg %p180
        $region66: #{tpu_custom_call.1} parent=59 // pred_check_branch
          %499 = sbr.rel (%p497) target = $region68
        $region67: #{tpu_custom_call.1} parent=59 // pred_region
          %s500 = sand.u32 %s165, 1
          %s501 = scalar_lea.sflag [#allocation10], %s500
          %s502 = sand.u32 %s165, 1
          %s503 = smul.addr %s502, 4
          %s504 = scalar_lea.vmem [#allocation9], %s503
          %506 = dma.done %s501, 64
        $region68: #{tpu_custom_call.1} parent=59 // pred_fallthru
          _
      $region60: #{tpu_custom_call.1} parent=5 // pred_fallthru
        _
    $region6: #{tpu_custom_call.1} parent=1 // loop_footer
      %s25 = sadd.s32 1, %s21
    $region7: #{tpu_custom_call.1} parent=1 // loop_footer_branch
      %20 = sbr.rel target = $region3
    $region8: #{tpu_custom_call.1} parent=1 // loop_exit
      _
    %507 = vsyncpa [#allocation3], 1
    %s508 = scalar_lea.sflag [#allocation3], 1
    %509 = vsyncpa %s508, 1
    %510 = vsyncpa [#allocation6], 1
    %s511 = scalar_lea.sflag [#allocation6], 1
    %512 = vsyncpa %s511, 1
    %513 = vsyncpa [#allocation4], 1
    %s514 = scalar_lea.sflag [#allocation4], 1
    %515 = vsyncpa %s514, 1
    %516 = vsyncpa [#allocation10], 1
    %s517 = scalar_lea.sflag [#allocation10], 1
    %518 = vsyncpa %s517, 1

</llo_original>
